<compile_context>
chip_gen: v7x
topology: tpu7x:2x2x1
jax: 0.10.0
libtpu: 0.0.40
codegen_flags: <defaults>
</compile_context>

<pallas_src>
import jax
import jax.numpy as jnp
from jax import lax
from jax.experimental import pallas as pl
from jax.experimental.pallas import tpu as pltpu


def _cdiv(a, b):
    return -(-a // b)


def _round_up(x, m):
    return _cdiv(x, m) * m


def _quantize_kernel(z_ref, w_hi_ref, w_lo_ref, wsq_ref, q_ref, idx_ref):
    # z_ref:    (T, D)    token tile (any float dtype; cast to bf16 for the MXU)
    # w_hi_ref: (S, D)    bf16 codebook high plane (resident, single-buffered)
    # w_lo_ref: (S, D)    bf16 residual plane w - f32(w_hi) (resident)
    # wsq_ref:  (1, S)    0.5*||w||^2, f32, +inf on padded rows (resident)
    # q_ref:    (T, D)    quantized rows (f32)
    # idx_ref:  (1, 1, T) selected code ids (int32), lane-dense store
    s_pad = w_hi_ref.shape[0]

    # argmin_j ||z - w_j||^2  ==  argmax_j (z . w_j - 0.5*||w_j||^2)
    zb = z_ref[...].astype(jnp.bfloat16)
    scores = lax.dot_general(
        zb, w_hi_ref[...],
        dimension_numbers=(((1,), (1,)), ((), ())),        # contract D of both
        preferred_element_type=jnp.float32) - wsq_ref[...]  # (T, S)

    idx = jnp.argmax(scores, axis=1).astype(jnp.int32)      # (T,)
    one_hot = (lax.broadcasted_iota(jnp.int32, scores.shape, 1)
               == idx[:, None]).astype(jnp.bfloat16)         # (T, S), exact 0/1

    # Codebook-row gather as two bf16 MXU passes (one per plane); hi + lo
    # reconstructs the f32 row to ~2^-16 relative (a third plane would make it
    # bit-exact; irrelevant at VQ-VAE scales).
    q = lax.dot_general(one_hot, w_hi_ref[...],
                        dimension_numbers=(((1,), (0,)), ((), ())),
                        preferred_element_type=jnp.float32)
    q = q + lax.dot_general(one_hot, w_lo_ref[...],
                            dimension_numbers=(((1,), (0,)), ((), ())),
                            preferred_element_type=jnp.float32)
    q_ref[...] = q.astype(q_ref.dtype)

    # Lane-dense index store: contract the (1,S) code-id row with the one-hot so
    # T lands on the lane axis (unmasked vst, no XLU transpose).  Code ids are
    # split hi/lo in bf16 so the MXU result is exact for S <= 65536.
    ids = lax.broadcasted_iota(jnp.int32, (1, s_pad), 1).astype(jnp.float32)
    ids_hi = ids.astype(jnp.bfloat16)
    lane = lax.dot_general(ids_hi, one_hot,
                           dimension_numbers=(((1,), (1,)), ((), ())),
                           preferred_element_type=jnp.float32)       # (1, T)
    if s_pad > 256:  # static: low plane only needed once ids exceed exact bf16 ints
        ids_lo = (ids - ids_hi.astype(jnp.float32)).astype(jnp.bfloat16)
        lane = lane + lax.dot_general(ids_lo, one_hot,
                                      dimension_numbers=(((1,), (1,)), ((), ())),
                                      preferred_element_type=jnp.float32)
    idx_ref[...] = lane.astype(jnp.int32)[None]


def quantize(z, weight, *, tile_n=None, vmem_limit_bytes=None):
    """Pallas implementation of Quantize.forward.

    z:      (N, code_dim)    float
    weight: (size, code_dim) float (nn.Embedding weight)
    returns (quantized (N, code_dim) float32, encoding_indices (N,) int32)
    """
    n, d = z.shape
    s, d_w = weight.shape
    assert d == d_w, "code_dim mismatch between z and codebook"

    # --- codebook prep (small, one-time; only S is padded, never D or N) ------
    s_pad = _round_up(s, 128)
    wf = weight.astype(jnp.float32)
    if s_pad != s:
        wf = jnp.zeros((s_pad, d), jnp.float32).at[:s, :].set(wf)
    w_hi = wf.astype(jnp.bfloat16)                                   # hi plane
    w_lo = (wf - w_hi.astype(jnp.float32)).astype(jnp.bfloat16)      # residual
    w_sq_half = 0.5 * jnp.sum(wf * wf, axis=1)
    w_sq_half = jnp.where(jnp.arange(s_pad) < s, w_sq_half, jnp.inf)
    w_sq_half = w_sq_half.astype(jnp.float32)[None, :]               # (1, S)

    # --- generation-aware VMEM budget & token tile ----------------------------
    try:
        phys_vmem = int(pltpu.get_tpu_info().vmem_capacity_bytes)
    except Exception:
        phys_vmem = 64 * 1024 * 1024          # conservative (v7x per-core) default
    if vmem_limit_bytes is None:
        # ~48 MiB scoped on v7x (64 MiB physical); ~100 MiB on v5e/v6e (128 MiB).
        vmem_limit_bytes = max(32 * 1024 * 1024,
                               min(phys_vmem - 16 * 1024 * 1024, 100 * 1024 * 1024))
    vmem_limit_bytes = int(vmem_limit_bytes)

    z_bytes = jnp.dtype(z.dtype).itemsize
    resident = s_pad * d * 2 * 2 + s_pad * 4      # hi + lo bf16 planes + norms

    def _tile_bytes(t):
        return (2 * t * d * z_bytes               # z blocks (double buffered)
                + 2 * t * d * 4                   # q blocks (double buffered)
                + 2 * t * 4                       # idx blocks
                + 3 * t * s_pad * 4)              # scores / one-hot temporaries

    if tile_n is None:
        budget = int(0.7 * vmem_limit_bytes) - resident
        tile_n = 2048
        while tile_n > 8 and _tile_bytes(tile_n) > budget:
            tile_n //= 2
        # TODO(synk): for huge codebooks (S >= ~4096 on v7x) additionally tile S
        # with a running best-score/best-index scratch instead of shrinking tile_n.
    tile_n = max(8, min(_round_up(tile_n, 8), _round_up(n, 8)))
    if n >= 16:   # prefer >= 2 grid steps so v7x megacore can split the parallel axis
        tile_n = min(tile_n, _round_up(_cdiv(n, 2), 8))
    num_tiles = _cdiv(n, tile_n)

    flops = 6 * n * s_pad * d                     # distance + 2 gather planes
    bytes_accessed = (n * d * z_bytes + n * d * 4 + n * 4
                      + s_pad * d * 4 + s_pad * 4)

    def _run(single_buffer_codebook):
        def _const_spec(shape):
            kwargs = {}
            if single_buffer_codebook:
                # Grid-invariant input: one VMEM buffer is enough.
                kwargs["pipeline_mode"] = pl.Buffered(1)
            return pl.BlockSpec(shape, lambda *_: (0,) * len(shape), **kwargs)

        return pl.pallas_call(
            _quantize_kernel,
            out_shape=(
                jax.ShapeDtypeStruct((n, d), jnp.float32),
                jax.ShapeDtypeStruct((num_tiles, 1, tile_n), jnp.int32),
            ),
            grid_spec=pltpu.PrefetchScalarGridSpec(
                num_scalar_prefetch=0,
                grid=(num_tiles,),
                in_specs=[
                    pl.BlockSpec((tile_n, d), lambda i: (i, 0)),        # z tile
                    _const_spec((s_pad, d)),                            # codebook hi
                    _const_spec((s_pad, d)),                            # codebook lo
                    _const_spec((1, s_pad)),                            # 0.5*||w||^2
                ],
                out_specs=(
                    pl.BlockSpec((tile_n, d), lambda i: (i, 0)),        # quantized
                    pl.BlockSpec((1, 1, tile_n), lambda i: (i, 0, 0)),  # indices
                ),
            ),
            compiler_params=pltpu.CompilerParams(
                dimension_semantics=("parallel",),
                vmem_limit_bytes=vmem_limit_bytes),
            cost_estimate=pl.CostEstimate(
                flops=flops, transcendentals=0, bytes_accessed=bytes_accessed),
        )(z, w_hi, w_lo, w_sq_half)

    try:
        q, idx = _run(single_buffer_codebook=True)
    except Exception:
        # jax version without BlockSpec pipeline_mode / pl.Buffered: fall back to
        # default double-buffering of the (grid-invariant) codebook inputs.
        q, idx = _run(single_buffer_codebook=False)

    indices = idx.reshape(-1)[:n]
    return q, indices


if __name__ == "__main__":
    # Module config (small, consistent with Quantize(size, code_dim))
    size = 16          # number of codebook entries
    code_dim = 32      # embedding dimension
    n_tokens = 8       # number of flattened input vectors (z is (N, code_dim))

    key = jax.random.PRNGKey(0)
    k_w, k_z = jax.random.split(key)

    # Deterministic "embedding.weight.data.uniform_(-1/size, 1/size)"
    weight = jax.random.uniform(
        k_w, (size, code_dim), dtype=jnp.float32,
        minval=-1.0 / size, maxval=1.0 / size)
    z = jax.random.normal(k_z, (n_tokens, code_dim), dtype=jnp.float32)

    quantized, indices = quantize(z, weight)
    quantized = jax.block_until_ready(quantized)
    indices = jax.block_until_ready(indices)

    assert quantized.shape == (n_tokens, code_dim)
    assert indices.shape == (n_tokens,)
    assert indices.dtype == jnp.int32

    # Reference (f32) distances.  The kernel's distance matmul runs in bf16, so
    # on exact near-ties the argmin could differ by rounding; check optimality of
    # the chosen code with a tolerance, plus a codebook-row gather check.
    d_ref = (jnp.sum(z ** 2, axis=1, keepdims=True)
             - 2.0 * z @ weight.T
             + jnp.sum(weight ** 2, axis=1)[None, :])
    min_d = d_ref.min(axis=1)
    chosen_d = d_ref[jnp.arange(n_tokens), indices]

    assert bool(jnp.all(indices >= 0)) and bool(jnp.all(indices < size))
    assert bool(jnp.all(chosen_d <= min_d + 1e-3))
    # hi+lo bf16 reconstruction of the gathered codebook rows: |err| <= ~2^-16*|w|.
    assert bool(jnp.allclose(quantized, weight[indices], atol=2e-6, rtol=1e-4))

    print("KERNEL_OK")
</pallas_src>

<mosaic_0001>
module attributes {stable_mosaic.version = 11 : i64} {
  func.func @_quantize_kernel(%arg0: i32, %arg1: memref<8x32xf32, #tpu.memory_space<vmem>>, %arg2: memref<128x32xbf16, #tpu.memory_space<vmem>>, %arg3: memref<128x32xbf16, #tpu.memory_space<vmem>>, %arg4: memref<1x128xf32, #tpu.memory_space<vmem>>, %arg5: memref<8x32xf32, #tpu.memory_space<vmem>>, %arg6: memref<1x1x8xi32, #tpu.memory_space<vmem>>) attributes {dimension_semantics = [#tpu.dimension_semantics<parallel>], iteration_bounds = array<i64: 1>, scalar_prefetch = 0 : i64, scratch_operands = 0 : i64, tpu.core_type = #tpu.core_type<tc>, window_params = [{transform_indices = @transform_0, window_bounds = array<i64: 8, 32>}, {pipeline_mode = #tpu.pipeline_mode<synchronous>, transform_indices = @transform_1, window_bounds = array<i64: 128, 32>}, {pipeline_mode = #tpu.pipeline_mode<synchronous>, transform_indices = @transform_2, window_bounds = array<i64: 128, 32>}, {pipeline_mode = #tpu.pipeline_mode<synchronous>, transform_indices = @transform_3, window_bounds = array<i64: 1, 128>}, {transform_indices = @transform_4, window_bounds = array<i64: 8, 32>}, {transform_indices = @transform_5, window_bounds = array<i64: 1, 1, 8>}]} {
    %c0 = arith.constant 0 : index
    %c0_0 = arith.constant 0 : index
    %0 = vector.load %arg1[%c0, %c0_0] : memref<8x32xf32, #tpu.memory_space<vmem>>, vector<8x32xf32>
    %1 = arith.truncf %0 : vector<8x32xf32> to vector<8x32xbf16>
    %c0_1 = arith.constant 0 : index
    %c0_2 = arith.constant 0 : index
    %2 = vector.load %arg2[%c0_1, %c0_2] : memref<128x32xbf16, #tpu.memory_space<vmem>>, vector<128x32xbf16>
    %cst = arith.constant dense<0.000000e+00> : vector<8x128xf32>
    %3 = tpu.matmul %1, %2, %cst {dimension_numbers = #tpu.dot_dimension_numbers<[1], [1], [0], [0], [0, 0, 1, 0], [], []>} : vector<8x32xbf16>, vector<128x32xbf16>, vector<8x128xf32> -> vector<8x128xf32>
    %c0_3 = arith.constant 0 : index
    %c0_4 = arith.constant 0 : index
    %4 = vector.load %arg4[%c0_3, %c0_4] : memref<1x128xf32, #tpu.memory_space<vmem>>, vector<1x128xf32>
    %5 = vector.broadcast %4 : vector<1x128xf32> to vector<8x128xf32>
    %6 = arith.subf %3, %5 : vector<8x128xf32>
    %7 = tpu.reduce_index %6 {axis = 1 : i32, kind = #tpu.reduction_kind<arg_max>} : vector<8x128xf32> -> vector<8xi32>
    %8 = tpu.iota {dimensions = array<i32: 1>} : vector<8x128xi32>
    %9 = vector.shape_cast %7 : vector<8xi32> to vector<8x1xi32>
    %10 = vector.broadcast %9 : vector<8x1xi32> to vector<8x128xi32>
    %11 = arith.cmpi eq, %8, %10 : vector<8x128xi32>
    %12 = arith.extui %11 : vector<8x128xi1> to vector<8x128xi32>
    %13 = arith.sitofp %12 : vector<8x128xi32> to vector<8x128xf32>
    %14 = arith.truncf %13 : vector<8x128xf32> to vector<8x128xbf16>
    %c0_5 = arith.constant 0 : index
    %c0_6 = arith.constant 0 : index
    %15 = vector.load %arg2[%c0_5, %c0_6] : memref<128x32xbf16, #tpu.memory_space<vmem>>, vector<128x32xbf16>
    %cst_7 = arith.constant dense<0.000000e+00> : vector<8x32xf32>
    %16 = tpu.matmul %14, %15, %cst_7 {dimension_numbers = #tpu.dot_dimension_numbers<[1], [0], [0], [1], [0, 0, 1, 1], [], []>} : vector<8x128xbf16>, vector<128x32xbf16>, vector<8x32xf32> -> vector<8x32xf32>
    %c0_8 = arith.constant 0 : index
    %c0_9 = arith.constant 0 : index
    %17 = vector.load %arg3[%c0_8, %c0_9] : memref<128x32xbf16, #tpu.memory_space<vmem>>, vector<128x32xbf16>
    %cst_10 = arith.constant dense<0.000000e+00> : vector<8x32xf32>
    %18 = tpu.matmul %14, %17, %cst_10 {dimension_numbers = #tpu.dot_dimension_numbers<[1], [0], [0], [1], [0, 0, 1, 1], [], []>} : vector<8x128xbf16>, vector<128x32xbf16>, vector<8x32xf32> -> vector<8x32xf32>
    %19 = arith.addf %16, %18 : vector<8x32xf32>
    %c0_11 = arith.constant 0 : index
    %c0_12 = arith.constant 0 : index
    %20 = vector.load %arg5[%c0_11, %c0_12] : memref<8x32xf32, #tpu.memory_space<vmem>>, vector<8x32xf32>
    tpu.vector_store %arg5[%c0_11, %c0_12], %19 {strides = array<i32>} : memref<8x32xf32, #tpu.memory_space<vmem>>, vector<8x32xf32>,
    %21 = tpu.iota {dimensions = array<i32: 1>} : vector<1x128xi32>
    %22 = arith.sitofp %21 : vector<1x128xi32> to vector<1x128xf32>
    %23 = arith.truncf %22 : vector<1x128xf32> to vector<1x128xbf16>
    %cst_13 = arith.constant dense<0.000000e+00> : vector<1x8xf32>
    %24 = tpu.matmul %23, %14, %cst_13 {dimension_numbers = #tpu.dot_dimension_numbers<[1], [1], [0], [0], [0, 0, 1, 0], [], []>} : vector<1x128xbf16>, vector<8x128xbf16>, vector<1x8xf32> -> vector<1x8xf32>
    %25 = arith.fptosi %24 : vector<1x8xf32> to vector<1x8xi32>
    %26 = vector.shape_cast %25 : vector<1x8xi32> to vector<1x1x8xi32>
    %c0_14 = arith.constant 0 : index
    %c0_15 = arith.constant 0 : index
    %c0_16 = arith.constant 0 : index
    %27 = vector.load %arg6[%c0_14, %c0_15, %c0_16] : memref<1x1x8xi32, #tpu.memory_space<vmem>>, vector<1x1x8xi32>
    tpu.vector_store %arg6[%c0_14, %c0_15, %c0_16], %26 {strides = array<i32>} : memref<1x1x8xi32, #tpu.memory_space<vmem>>, vector<1x1x8xi32>,
    return
  }
  func.func @transform_0(%arg0: i32) -> (i32, i32) {
    %c0_i32 = arith.constant 0 : i32
    %c0_i32_0 = arith.constant 0 : i32
    return %arg0, %c0_i32 : i32, i32
  }
  func.func @transform_1(%arg0: i32) -> (i32, i32) {
    %c0_i32 = arith.constant 0 : i32
    %c0_i32_0 = arith.constant 0 : i32
    %c0_i32_1 = arith.constant 0 : i32
    return %c0_i32, %c0_i32_0 : i32, i32
  }
  func.func @transform_2(%arg0: i32) -> (i32, i32) {
    %c0_i32 = arith.constant 0 : i32
    %c0_i32_0 = arith.constant 0 : i32
    %c0_i32_1 = arith.constant 0 : i32
    return %c0_i32, %c0_i32_0 : i32, i32
  }
  func.func @transform_3(%arg0: i32) -> (i32, i32) {
    %c0_i32 = arith.constant 0 : i32
    %c0_i32_0 = arith.constant 0 : i32
    %c0_i32_1 = arith.constant 0 : i32
    return %c0_i32, %c0_i32_0 : i32, i32
  }
  func.func @transform_4(%arg0: i32) -> (i32, i32) {
    %c0_i32 = arith.constant 0 : i32
    %c0_i32_0 = arith.constant 0 : i32
    return %arg0, %c0_i32 : i32, i32
  }
  func.func @transform_5(%arg0: i32) -> (i32, i32, i32) {
    %c0_i32 = arith.constant 0 : i32
    %c0_i32_0 = arith.constant 0 : i32
    %c0_i32_1 = arith.constant 0 : i32
    return %arg0, %c0_i32, %c0_i32_0 : i32, i32, i32
  }
}

module attributes {stable_mosaic.version = 11 : i64} {
  func.func @_quantize_kernel(%arg0: i32, %arg1: memref<8x32xf32, #tpu.memory_space<vmem>>, %arg2: memref<128x32xbf16, #tpu.memory_space<vmem>>, %arg3: memref<128x32xbf16, #tpu.memory_space<vmem>>, %arg4: memref<1x128xf32, #tpu.memory_space<vmem>>, %arg5: memref<8x32xf32, #tpu.memory_space<vmem>>, %arg6: memref<1x1x8xi32, #tpu.memory_space<vmem>>) attributes {dimension_semantics = [#tpu.dimension_semantics<parallel>], iteration_bounds = array<i64: 1>, scalar_prefetch = 0 : i64, scratch_operands = 0 : i64, tpu.core_type = #tpu.core_type<tc>, window_params = [{transform_indices = @transform_0, window_bounds = array<i64: 8, 32>}, {pipeline_mode = #tpu.pipeline_mode<synchronous>, transform_indices = @transform_1, window_bounds = array<i64: 128, 32>}, {pipeline_mode = #tpu.pipeline_mode<synchronous>, transform_indices = @transform_2, window_bounds = array<i64: 128, 32>}, {pipeline_mode = #tpu.pipeline_mode<synchronous>, transform_indices = @transform_3, window_bounds = array<i64: 1, 128>}, {transform_indices = @transform_4, window_bounds = array<i64: 8, 32>}, {transform_indices = @transform_5, window_bounds = array<i64: 1, 1, 8>}]} {
    %c0 = arith.constant 0 : index
    %c0_0 = arith.constant 0 : index
    %0 = vector.load %arg1[%c0, %c0_0] : memref<8x32xf32, #tpu.memory_space<vmem>>, vector<8x32xf32>
    %1 = arith.truncf %0 : vector<8x32xf32> to vector<8x32xbf16>
    %c0_1 = arith.constant 0 : index
    %c0_2 = arith.constant 0 : index
    %2 = vector.load %arg2[%c0_1, %c0_2] : memref<128x32xbf16, #tpu.memory_space<vmem>>, vector<128x32xbf16>
    %cst = arith.constant dense<0.000000e+00> : vector<8x128xf32>
    %3 = tpu.matmul %1, %2, %cst {dimension_numbers = #tpu.dot_dimension_numbers<[1], [1], [0], [0], [0, 0, 1, 0], [], []>} : vector<8x32xbf16>, vector<128x32xbf16>, vector<8x128xf32> -> vector<8x128xf32>
    %c0_3 = arith.constant 0 : index
    %c0_4 = arith.constant 0 : index
    %4 = vector.load %arg4[%c0_3, %c0_4] : memref<1x128xf32, #tpu.memory_space<vmem>>, vector<1x128xf32>
    %5 = vector.broadcast %4 : vector<1x128xf32> to vector<8x128xf32>
    %6 = arith.subf %3, %5 : vector<8x128xf32>
    %7 = tpu.reduce_index %6 {axis = 1 : i32, kind = #tpu.reduction_kind<arg_max>} : vector<8x128xf32> -> vector<8xi32>
    %8 = tpu.iota {dimensions = array<i32: 1>} : vector<8x128xi32>
    %9 = vector.shape_cast %7 : vector<8xi32> to vector<8x1xi32>
    %10 = vector.broadcast %9 : vector<8x1xi32> to vector<8x128xi32>
    %11 = arith.cmpi eq, %8, %10 : vector<8x128xi32>
    %12 = arith.extui %11 : vector<8x128xi1> to vector<8x128xi32>
    %13 = arith.sitofp %12 : vector<8x128xi32> to vector<8x128xf32>
    %14 = arith.truncf %13 : vector<8x128xf32> to vector<8x128xbf16>
    %c0_5 = arith.constant 0 : index
    %c0_6 = arith.constant 0 : index
    %15 = vector.load %arg2[%c0_5, %c0_6] : memref<128x32xbf16, #tpu.memory_space<vmem>>, vector<128x32xbf16>
    %cst_7 = arith.constant dense<0.000000e+00> : vector<8x32xf32>
    %16 = tpu.matmul %14, %15, %cst_7 {dimension_numbers = #tpu.dot_dimension_numbers<[1], [0], [0], [1], [0, 0, 1, 1], [], []>} : vector<8x128xbf16>, vector<128x32xbf16>, vector<8x32xf32> -> vector<8x32xf32>
    %c0_8 = arith.constant 0 : index
    %c0_9 = arith.constant 0 : index
    %17 = vector.load %arg3[%c0_8, %c0_9] : memref<128x32xbf16, #tpu.memory_space<vmem>>, vector<128x32xbf16>
    %cst_10 = arith.constant dense<0.000000e+00> : vector<8x32xf32>
    %18 = tpu.matmul %14, %17, %cst_10 {dimension_numbers = #tpu.dot_dimension_numbers<[1], [0], [0], [1], [0, 0, 1, 1], [], []>} : vector<8x128xbf16>, vector<128x32xbf16>, vector<8x32xf32> -> vector<8x32xf32>
    %19 = arith.addf %16, %18 : vector<8x32xf32>
    %c0_11 = arith.constant 0 : index
    %c0_12 = arith.constant 0 : index
    %20 = vector.load %arg5[%c0_11, %c0_12] : memref<8x32xf32, #tpu.memory_space<vmem>>, vector<8x32xf32>
    tpu.vector_store %arg5[%c0_11, %c0_12], %19 {strides = array<i32>} : memref<8x32xf32, #tpu.memory_space<vmem>>, vector<8x32xf32>,
    %21 = tpu.iota {dimensions = array<i32: 1>} : vector<1x128xi32>
    %22 = arith.sitofp %21 : vector<1x128xi32> to vector<1x128xf32>
    %23 = arith.truncf %22 : vector<1x128xf32> to vector<1x128xbf16>
    %cst_13 = arith.constant dense<0.000000e+00> : vector<1x8xf32>
    %24 = tpu.matmul %23, %14, %cst_13 {dimension_numbers = #tpu.dot_dimension_numbers<[1], [1], [0], [0], [0, 0, 1, 0], [], []>} : vector<1x128xbf16>, vector<8x128xbf16>, vector<1x8xf32> -> vector<1x8xf32>
    %25 = arith.fptosi %24 : vector<1x8xf32> to vector<1x8xi32>
    %26 = vector.shape_cast %25 : vector<1x8xi32> to vector<1x1x8xi32>
    %c0_14 = arith.constant 0 : index
    %c0_15 = arith.constant 0 : index
    %c0_16 = arith.constant 0 : index
    %27 = vector.load %arg6[%c0_14, %c0_15, %c0_16] : memref<1x1x8xi32, #tpu.memory_space<vmem>>, vector<1x1x8xi32>
    tpu.vector_store %arg6[%c0_14, %c0_15, %c0_16], %26 {strides = array<i32>} : memref<1x1x8xi32, #tpu.memory_space<vmem>>, vector<1x1x8xi32>,
    return
  }
  func.func @transform_0(%arg0: i32) -> (i32, i32) {
    %c0_i32 = arith.constant 0 : i32
    %c0_i32_0 = arith.constant 0 : i32
    return %arg0, %c0_i32 : i32, i32
  }
  func.func @transform_1(%arg0: i32) -> (i32, i32) {
    %c0_i32 = arith.constant 0 : i32
    %c0_i32_0 = arith.constant 0 : i32
    %c0_i32_1 = arith.constant 0 : i32
    return %c0_i32, %c0_i32_0 : i32, i32
  }
  func.func @transform_2(%arg0: i32) -> (i32, i32) {
    %c0_i32 = arith.constant 0 : i32
    %c0_i32_0 = arith.constant 0 : i32
    %c0_i32_1 = arith.constant 0 : i32
    return %c0_i32, %c0_i32_0 : i32, i32
  }
  func.func @transform_3(%arg0: i32) -> (i32, i32) {
    %c0_i32 = arith.constant 0 : i32
    %c0_i32_0 = arith.constant 0 : i32
    %c0_i32_1 = arith.constant 0 : i32
    return %c0_i32, %c0_i32_0 : i32, i32
  }
  func.func @transform_4(%arg0: i32) -> (i32, i32) {
    %c0_i32 = arith.constant 0 : i32
    %c0_i32_0 = arith.constant 0 : i32
    return %arg0, %c0_i32 : i32, i32
  }
  func.func @transform_5(%arg0: i32) -> (i32, i32, i32) {
    %c0_i32 = arith.constant 0 : i32
    %c0_i32_0 = arith.constant 0 : i32
    %c0_i32_1 = arith.constant 0 : i32
    return %arg0, %c0_i32, %c0_i32_0 : i32, i32, i32
  }
}

</mosaic_0001>

<llo_original>
// kernel: tpu_custom_call.1
$region0: #{tpu_custom_call.1}
  #allocation0 [shape = 'u32[]', space=smem, size = 0x4, offset = 0x4, fixed_abs, tag = 'smem constant byte address 0x4 - core index']
  #allocation1 [shape = 'u32[144,128]{1,0:T(1,128)}', space=vmem, size = 0x12000, scoped, tag = 'internal scratch']
  %s0 = inlined_call_operand.vmem [shape: f32[8,32], index: 0, kind: input, shape index: {}]
  %s1 = inlined_call_operand.vmem [shape: bf16[128,32], index: 1, kind: input, shape index: {}]
  %s2 = inlined_call_operand.vmem [shape: bf16[128,32], index: 2, kind: input, shape index: {}]
  %s3 = inlined_call_operand.vmem [shape: f32[1,128], index: 3, kind: input, shape index: {}]
  %s4 = inlined_call_operand.hbm [shape: f32[8,32], index: 4, kind: output, shape index: {0}]
  %s5 = inlined_call_operand.hbm [shape: s32[1,1,8], index: 5, kind: output, shape index: {1}]
  %6 = xla_tuple %s4, %s5
  %s7 = sld [smem:[#allocation0]]
  $region34: #{tpu_custom_call.1} parent=0
    _
  %s9 = ssub.s32 1, %s7
  %s10 = scalar_select 0, %s9, %s7
  $region1: #{tpu_custom_call.1} parent=0
    #allocation2 [shape = 'u8[4096]{0}', space=vmem, size = 0x1000, scoped, tag = 'output window, operand 0, single buffered']
    #allocation3 [shape = 's32[1]{0}', space=sflag, size = 0x4, scoped, tag = 'scoped memory for tpu_custom_call.1']
    #allocation4 [shape = 'u8[512]{0}', space=vmem, size = 0x400, scoped, tag = 'output window, operand 1, single buffered']
    #allocation5 [shape = 's32[1]{0}', space=sflag, size = 0x4, scoped, tag = 'scoped memory for tpu_custom_call.1']
    %11 = vsyncpa [#allocation3], 0
    %12 = vsyncpa [#allocation5], 0
    // Predicated region
    $region2: #{tpu_custom_call.1} parent=1 // pred_check
      _
    $region3: #{tpu_custom_call.1} parent=1 // pred_check_branch
      %14 = sbr.rel (0) target = $region5
    $region4: #{tpu_custom_call.1} parent=1 // pred_region
      _
    $region5: #{tpu_custom_call.1} parent=1 // pred_fallthru
      _
    // Predicated region
    $region6: #{tpu_custom_call.1} parent=1 // pred_check
      _
    $region7: #{tpu_custom_call.1} parent=1 // pred_check_branch
      %16 = sbr.rel (0) target = $region9
    $region8: #{tpu_custom_call.1} parent=1 // pred_region
      _
    $region9: #{tpu_custom_call.1} parent=1 // pred_fallthru
      _
    // Predicated region
    $region10: #{tpu_custom_call.1} parent=1 // pred_check
      _
    $region11: #{tpu_custom_call.1} parent=1 // pred_check_branch
      %18 = sbr.rel (0) target = $region13
    $region12: #{tpu_custom_call.1} parent=1 // pred_region
      _
    $region13: #{tpu_custom_call.1} parent=1 // pred_fallthru
      _
    // Predicated region
    $region14: #{tpu_custom_call.1} parent=1 // pred_check
      _
    $region15: #{tpu_custom_call.1} parent=1 // pred_check_branch
      %20 = sbr.rel (0) target = $region17
    $region16: #{tpu_custom_call.1} parent=1 // pred_region
      _
    $region17: #{tpu_custom_call.1} parent=1 // pred_fallthru
      _
    %v22 = vld [vmem:[%s0] sm:$0xff]
    %v23 = vpack.c.bf16 %v22, %v22
    %v24 = vld [vmem:[%s1] sm:$0xf]
    %v25 = vld [vmem:[%s1 + $0x4] sm:$0xf]
    %v26 = vld [vmem:[%s1 + $0x8] sm:$0xf]
    %v27 = vld [vmem:[%s1 + $0xc] sm:$0xf]
    %v28 = vld [vmem:[%s1 + $0x10] sm:$0xf]
    %v29 = vld [vmem:[%s1 + $0x14] sm:$0xf]
    %v30 = vld [vmem:[%s1 + $0x18] sm:$0xf]
    %v31 = vld [vmem:[%s1 + $0x1c] sm:$0xf]
    %v32 = vld [vmem:[%s1 + $0x20] sm:$0xf]
    %v33 = vld [vmem:[%s1 + $0x24] sm:$0xf]
    %v34 = vld [vmem:[%s1 + $0x28] sm:$0xf]
    %v35 = vld [vmem:[%s1 + $0x2c] sm:$0xf]
    %v36 = vld [vmem:[%s1 + $0x30] sm:$0xf]
    %v37 = vld [vmem:[%s1 + $0x34] sm:$0xf]
    %v38 = vld [vmem:[%s1 + $0x38] sm:$0xf]
    %v39 = vld [vmem:[%s1 + $0x3c] sm:$0xf]
    %v56 = vunpack.c.l.b16 %v24
    %v57 = vunpack.c.l.b16 %v25
    %v58 = vunpack.c.l.b16 %v26
    %v59 = vunpack.c.l.b16 %v27
    %v60 = vunpack.c.l.b16 %v28
    %v61 = vunpack.c.l.b16 %v29
    %v62 = vunpack.c.l.b16 %v30
    %v63 = vunpack.c.l.b16 %v31
    %v64 = vunpack.c.l.b16 %v32
    %v65 = vunpack.c.l.b16 %v33
    %v66 = vunpack.c.l.b16 %v34
    %v67 = vunpack.c.l.b16 %v35
    %v68 = vunpack.c.l.b16 %v36
    %v69 = vunpack.c.l.b16 %v37
    %v70 = vunpack.c.l.b16 %v38
    %v71 = vunpack.c.l.b16 %v39
    %v72 = vpack.c.b16 %v57, %v56
    %v73 = vpack.c.b16 %v59, %v58
    %v74 = vpack.c.b16 %v61, %v60
    %v75 = vpack.c.b16 %v63, %v62
    %v76 = vpack.c.b16 %v65, %v64
    %v77 = vpack.c.b16 %v67, %v66
    %v78 = vpack.c.b16 %v69, %v68
    %v79 = vpack.c.b16 %v71, %v70
    %vm80 = vcmask 261120
    %v82 = vsel %vm80, %v23, 0
    %v85 = vsel %vm80, %v72, 0
    %v88 = vsel %vm80, %v73, 0
    %v91 = vsel %vm80, %v74, 0
    %v94 = vsel %vm80, %v75, 0
    %v97 = vsel %vm80, %v76, 0
    %v100 = vsel %vm80, %v77, 0
    %v103 = vsel %vm80, %v78, 0
    %v106 = vsel %vm80, %v79, 0
    %108 = vmatprep.subr.bf16.mxu0 0
    %109 = vmatpush1.bf16.xpose.msra.mxu0 %v85
    %110 = vmatprep.subr.bf16.mxu0 0
    %111 = vmatpush1.bf16.xpose.msra.mxu0 %v88
    %112 = vmatprep.subr.bf16.mxu0 0
    %113 = vmatpush1.bf16.xpose.msra.mxu0 %v91
    %114 = vmatprep.subr.bf16.mxu0 0
    %115 = vmatpush1.bf16.xpose.msra.mxu0 %v94
    %116 = vmatprep.subr.bf16.mxu0 0
    %117 = vmatpush1.bf16.xpose.msra.mxu0 %v97
    %118 = vmatprep.subr.bf16.mxu0 0
    %119 = vmatpush1.bf16.xpose.msra.mxu0 %v100
    %120 = vmatprep.subr.bf16.mxu0 0
    %121 = vmatpush1.bf16.xpose.msra.mxu0 %v103
    %122 = vmatprep.subr.bf16.mxu0 0
    %123 = vmatpush1.bf16.xpose.msra.mxu0 %v106
    %124 = vmatprep.subr.bf16.mxu0 0
    %125 = vmatpush1.bf16.xpose.msra.mxu0 0
    %126 = vmatprep.subr.bf16.mxu0 0
    %127 = vmatpush1.bf16.xpose.msra.mxu0 0
    %128 = vmatprep.subr.bf16.mxu0 0
    %129 = vmatpush1.bf16.xpose.msra.mxu0 0
    %130 = vmatprep.subr.bf16.mxu0 0
    %131 = vmatpush1.bf16.xpose.msra.mxu0 0
    %132 = vmatprep.subr.bf16.mxu0 0
    %133 = vmatpush1.bf16.xpose.msra.mxu0 0
    %134 = vmatprep.subr.bf16.mxu0 0
    %135 = vmatpush1.bf16.xpose.msra.mxu0 0
    %136 = vmatprep.subr.bf16.mxu0 0
    %137 = vmatpush1.bf16.xpose.msra.mxu0 0
    %138 = vmatprep.subr.bf16.mxu0 0
    %139 = vmatpush1.bf16.xpose.msra.mxu0 0
    %140 = vmatprep.mubr.bf16.mxu0 0
    %141 = vmatmul.mubr.bf16.gmra.mrb[0].mxu0 %v82
    %v142 = vpop.f32.mrb[0].mxu0
    %v143 = vadd.f32 0.0, %v142
    %v144 = vpop.f32.mrb[0].mxu0
    %v145 = vpop.f32.mrb[0].mxu0
    %v146 = vpop.f32.mrb[0].mxu0
    %147 = vdwg.mxu0
    %v148 = vld [vmem:[%s3] sm:$0x1]
    %v150 = vlaneseq
    %v151 = vshrl.u32 %v150, 7
    %v152 = vsub.s32 0, %v151
    %v153 = vrot.slane %v148, %v152
    %v155 = vsub.f32 %v143, %v153
    %156 = vmax.index.xlane.f32.xlu0 %v155
    %v157 = vpop.xlane.xlu0 %156
    %v158 = vlaneseq
    %v159 = vand.u32 %v158, 127
    %vm160 = vcmp.eq.s32.totalorder %v159, %v157
    %v161 = vsel %vm160, 1, 0
    %v162 = vcvt.s32.f32 %v161
    %v163 = vpack.c.bf16 %v162, %v162
    %v164 = vld [vmem:[%s2] sm:$0xf]
    %v165 = vld [vmem:[%s2 + $0x4] sm:$0xf]
    %v166 = vld [vmem:[%s2 + $0x8] sm:$0xf]
    %v167 = vld [vmem:[%s2 + $0xc] sm:$0xf]
    %v168 = vld [vmem:[%s2 + $0x10] sm:$0xf]
    %v169 = vld [vmem:[%s2 + $0x14] sm:$0xf]
    %v170 = vld [vmem:[%s2 + $0x18] sm:$0xf]
    %v171 = vld [vmem:[%s2 + $0x1c] sm:$0xf]
    %v172 = vld [vmem:[%s2 + $0x20] sm:$0xf]
    %v173 = vld [vmem:[%s2 + $0x24] sm:$0xf]
    %v174 = vld [vmem:[%s2 + $0x28] sm:$0xf]
    %v175 = vld [vmem:[%s2 + $0x2c] sm:$0xf]
    %v176 = vld [vmem:[%s2 + $0x30] sm:$0xf]
    %v177 = vld [vmem:[%s2 + $0x34] sm:$0xf]
    %v178 = vld [vmem:[%s2 + $0x38] sm:$0xf]
    %v179 = vld [vmem:[%s2 + $0x3c] sm:$0xf]
    %v196 = vunpack.c.l.b16 %v164
    %v197 = vunpack.c.l.b16 %v165
    %v198 = vunpack.c.l.b16 %v166
    %v199 = vunpack.c.l.b16 %v167
    %v200 = vunpack.c.l.b16 %v168
    %v201 = vunpack.c.l.b16 %v169
    %v202 = vunpack.c.l.b16 %v170
    %v203 = vunpack.c.l.b16 %v171
    %v204 = vunpack.c.l.b16 %v172
    %v205 = vunpack.c.l.b16 %v173
    %v206 = vunpack.c.l.b16 %v174
    %v207 = vunpack.c.l.b16 %v175
    %v208 = vunpack.c.l.b16 %v176
    %v209 = vunpack.c.l.b16 %v177
    %v210 = vunpack.c.l.b16 %v178
    %v211 = vunpack.c.l.b16 %v179
    %v212 = vpack.c.b16 %v197, %v196
    %v213 = vpack.c.b16 %v199, %v198
    %v214 = vpack.c.b16 %v201, %v200
    %v215 = vpack.c.b16 %v203, %v202
    %v216 = vpack.c.b16 %v205, %v204
    %v217 = vpack.c.b16 %v207, %v206
    %v218 = vpack.c.b16 %v209, %v208
    %v219 = vpack.c.b16 %v211, %v210
    %228 = vmatprep.subr.bf16.mxu0 0
    %229 = vmatpush1.bf16.msra.mxu0 %v212
    %230 = vmatprep.subr.bf16.mxu0 0
    %231 = vmatpush1.bf16.msra.mxu0 %v213
    %232 = vmatprep.subr.bf16.mxu0 0
    %233 = vmatpush1.bf16.msra.mxu0 %v214
    %234 = vmatprep.subr.bf16.mxu0 0
    %235 = vmatpush1.bf16.msra.mxu0 %v215
    %236 = vmatprep.subr.bf16.mxu0 0
    %237 = vmatpush1.bf16.msra.mxu0 %v216
    %238 = vmatprep.subr.bf16.mxu0 0
    %239 = vmatpush1.bf16.msra.mxu0 %v217
    %240 = vmatprep.subr.bf16.mxu0 0
    %241 = vmatpush1.bf16.msra.mxu0 %v218
    %242 = vmatprep.subr.bf16.mxu0 0
    %243 = vmatpush1.bf16.msra.mxu0 %v219
    %244 = vmatprep.subr.bf16.mxu0 0
    %245 = vmatpush1.bf16.msra.mxu0 0
    %246 = vmatprep.subr.bf16.mxu0 0
    %247 = vmatpush1.bf16.msra.mxu0 0
    %248 = vmatprep.subr.bf16.mxu0 0
    %249 = vmatpush1.bf16.msra.mxu0 0
    %250 = vmatprep.subr.bf16.mxu0 0
    %251 = vmatpush1.bf16.msra.mxu0 0
    %252 = vmatprep.subr.bf16.mxu0 0
    %253 = vmatpush1.bf16.msra.mxu0 0
    %254 = vmatprep.subr.bf16.mxu0 0
    %255 = vmatpush1.bf16.msra.mxu0 0
    %256 = vmatprep.subr.bf16.mxu0 0
    %257 = vmatpush1.bf16.msra.mxu0 0
    %258 = vmatprep.subr.bf16.mxu0 0
    %259 = vmatpush1.bf16.msra.mxu0 0
    %260 = vmatprep.mubr.bf16.mxu0 0
    %261 = vmatmul.mubr.bf16.gmra.mrb[0].mxu0 %v163
    %v262 = vpop.f32.mrb[0].mxu0
    %v263 = vadd.f32 0.0, %v262
    %v264 = vpop.f32.mrb[0].mxu0
    %v265 = vpop.f32.mrb[0].mxu0
    %v266 = vpop.f32.mrb[0].mxu0
    %267 = vdwg.mxu0
    %276 = vmatprep.subr.bf16.mxu0 0
    %277 = vmatpush1.bf16.msra.mxu0 %v72
    %278 = vmatprep.subr.bf16.mxu0 0
    %279 = vmatpush1.bf16.msra.mxu0 %v73
    %280 = vmatprep.subr.bf16.mxu0 0
    %281 = vmatpush1.bf16.msra.mxu0 %v74
    %282 = vmatprep.subr.bf16.mxu0 0
    %283 = vmatpush1.bf16.msra.mxu0 %v75
    %284 = vmatprep.subr.bf16.mxu0 0
    %285 = vmatpush1.bf16.msra.mxu0 %v76
    %286 = vmatprep.subr.bf16.mxu0 0
    %287 = vmatpush1.bf16.msra.mxu0 %v77
    %288 = vmatprep.subr.bf16.mxu0 0
    %289 = vmatpush1.bf16.msra.mxu0 %v78
    %290 = vmatprep.subr.bf16.mxu0 0
    %291 = vmatpush1.bf16.msra.mxu0 %v79
    %292 = vmatprep.subr.bf16.mxu0 0
    %293 = vmatpush1.bf16.msra.mxu0 0
    %294 = vmatprep.subr.bf16.mxu0 0
    %295 = vmatpush1.bf16.msra.mxu0 0
    %296 = vmatprep.subr.bf16.mxu0 0
    %297 = vmatpush1.bf16.msra.mxu0 0
    %298 = vmatprep.subr.bf16.mxu0 0
    %299 = vmatpush1.bf16.msra.mxu0 0
    %300 = vmatprep.subr.bf16.mxu0 0
    %301 = vmatpush1.bf16.msra.mxu0 0
    %302 = vmatprep.subr.bf16.mxu0 0
    %303 = vmatpush1.bf16.msra.mxu0 0
    %304 = vmatprep.subr.bf16.mxu0 0
    %305 = vmatpush1.bf16.msra.mxu0 0
    %306 = vmatprep.subr.bf16.mxu0 0
    %307 = vmatpush1.bf16.msra.mxu0 0
    %308 = vmatprep.mubr.bf16.mxu0 0
    %309 = vmatmul.mubr.bf16.gmra.mrb[0].mxu0 %v163
    %v310 = vpop.f32.mrb[0].mxu0
    %v311 = vadd.f32 %v263, %v310
    %v312 = vpop.f32.mrb[0].mxu0
    %v313 = vpop.f32.mrb[0].mxu0
    %v314 = vpop.f32.mrb[0].mxu0
    %315 = vdwg.mxu0
    %316 = vst.msk [vmem:[#allocation2] sm:$0xff] %vm80, %v311
    %v317 = vcvt.s32.f32 %v159
    %v318 = vpack.c.bf16 %v317, %v317
    %319 = vmatprep.subr.bf16.mxu0 0
    %320 = vmatpush1.bf16.xpose.msra.mxu0 %v163
    %321 = vmatprep.subr.bf16.mxu0 0
    %322 = vmatpush1.bf16.xpose.msra.mxu0 0
    %323 = vmatprep.subr.bf16.mxu0 0
    %324 = vmatpush1.bf16.xpose.msra.mxu0 0
    %325 = vmatprep.subr.bf16.mxu0 0
    %326 = vmatpush1.bf16.xpose.msra.mxu0 0
    %327 = vmatprep.subr.bf16.mxu0 0
    %328 = vmatpush1.bf16.xpose.msra.mxu0 0
    %329 = vmatprep.subr.bf16.mxu0 0
    %330 = vmatpush1.bf16.xpose.msra.mxu0 0
    %331 = vmatprep.subr.bf16.mxu0 0
    %332 = vmatpush1.bf16.xpose.msra.mxu0 0
    %333 = vmatprep.subr.bf16.mxu0 0
    %334 = vmatpush1.bf16.xpose.msra.mxu0 0
    %335 = vmatprep.subr.bf16.mxu0 0
    %336 = vmatpush1.bf16.xpose.msra.mxu0 0
    %337 = vmatprep.subr.bf16.mxu0 0
    %338 = vmatpush1.bf16.xpose.msra.mxu0 0
    %339 = vmatprep.subr.bf16.mxu0 0
    %340 = vmatpush1.bf16.xpose.msra.mxu0 0
    %341 = vmatprep.subr.bf16.mxu0 0
    %342 = vmatpush1.bf16.xpose.msra.mxu0 0
    %343 = vmatprep.subr.bf16.mxu0 0
    %344 = vmatpush1.bf16.xpose.msra.mxu0 0
    %345 = vmatprep.subr.bf16.mxu0 0
    %346 = vmatpush1.bf16.xpose.msra.mxu0 0
    %347 = vmatprep.subr.bf16.mxu0 0
    %348 = vmatpush1.bf16.xpose.msra.mxu0 0
    %349 = vmatprep.subr.bf16.mxu0 0
    %350 = vmatpush1.bf16.xpose.msra.mxu0 0
    %351 = vmatprep.mubr.bf16.mxu0 0
    %352 = vmatmul.mubr.bf16.gmra.mrb[0].mxu0 %v318
    %v353 = vpop.f32.mrb[0].mxu0
    %v354 = vadd.f32 0.0, %v353
    %v355 = vpop.f32.mrb[0].mxu0
    %v356 = vpop.f32.mrb[0].mxu0
    %v357 = vpop.f32.mrb[0].mxu0
    %358 = vdwg.mxu0
    %v359 = vcvt.f32.s32.to.zero.pseudo %v354
    %vm360 = vcmask 57344
    %361 = vst.msk [vmem:[#allocation4] sm:$0x1] %vm360, %v359
    // Predicated region
    $region18: #{tpu_custom_call.1} parent=1 // pred_check
      _
    $region19: #{tpu_custom_call.1} parent=1 // pred_check_branch
      %363 = sbr.rel (0) target = $region21
    $region20: #{tpu_custom_call.1} parent=1 // pred_region
      %s365 = ssub.s32 128, 128
      %366 = vsyncadd [#allocation3], %s365
      %s368 = sshll.u32 [#allocation2], 4
      %s369 = int_to_ptr.vmem [resolvable:$true] %s368
      %371 = dma.vmem_to_hbm [thread:$0]  %s369, 128, %s4, [#allocation3]
    $region21: #{tpu_custom_call.1} parent=1 // pred_fallthru
      _
    // Predicated region
    $region22: #{tpu_custom_call.1} parent=1 // pred_check
      _
    $region23: #{tpu_custom_call.1} parent=1 // pred_check_branch
      %373 = sbr.rel (0) target = $region25
    $region24: #{tpu_custom_call.1} parent=1 // pred_region
      %s375 = ssub.s32 16, 16
      %376 = vsyncadd [#allocation5], %s375
      %s378 = sshll.u32 [#allocation4], 4
      %s379 = int_to_ptr.vmem [resolvable:$true] %s378
      %381 = dma.vmem_to_hbm [thread:$0]  %s379, 16, %s5, [#allocation5]
    $region25: #{tpu_custom_call.1} parent=1 // pred_fallthru
      _
    // Predicated region
    $region26: #{tpu_custom_call.1} parent=1 // pred_check
      _
    $region27: #{tpu_custom_call.1} parent=1 // pred_check_branch
      %383 = sbr.rel (0) target = $region29
    $region28: #{tpu_custom_call.1} parent=1 // pred_region
      %384 = dma.done [#allocation3], 128
    $region29: #{tpu_custom_call.1} parent=1 // pred_fallthru
      _
    // Predicated region
    $region30: #{tpu_custom_call.1} parent=1 // pred_check
      _
    $region31: #{tpu_custom_call.1} parent=1 // pred_check_branch
      %386 = sbr.rel (0) target = $region33
    $region32: #{tpu_custom_call.1} parent=1 // pred_region
      %387 = dma.done [#allocation5], 16
    $region33: #{tpu_custom_call.1} parent=1 // pred_fallthru
      _
    %388 = vsyncpa [#allocation3], 1
    %389 = vsyncpa [#allocation5], 1

// kernel: tpu_custom_call.1
$region0: #{tpu_custom_call.1}
  #allocation0 [shape = 'u32[]', space=smem, size = 0x4, offset = 0x4, fixed_abs, tag = 'smem constant byte address 0x4 - core index']
  #allocation1 [shape = 'u32[144,128]{1,0:T(1,128)}', space=vmem, size = 0x12000, scoped, tag = 'internal scratch']
  %s0 = inlined_call_operand.vmem [shape: f32[8,32], index: 0, kind: input, shape index: {}]
  %s1 = inlined_call_operand.vmem [shape: bf16[128,32], index: 1, kind: input, shape index: {}]
  %s2 = inlined_call_operand.vmem [shape: bf16[128,32], index: 2, kind: input, shape index: {}]
  %s3 = inlined_call_operand.vmem [shape: f32[1,128], index: 3, kind: input, shape index: {}]
  %s4 = inlined_call_operand.hbm [shape: f32[8,32], index: 4, kind: output, shape index: {0}]
  %s5 = inlined_call_operand.hbm [shape: s32[1,1,8], index: 5, kind: output, shape index: {1}]
  %6 = xla_tuple %s4, %s5
  %s7 = sld [smem:[#allocation0]]
  $region34: #{tpu_custom_call.1} parent=0
    _
  %s9 = ssub.s32 1, %s7
  %s10 = scalar_select 0, %s9, %s7
  $region1: #{tpu_custom_call.1} parent=0
    #allocation2 [shape = 'u8[4096]{0}', space=vmem, size = 0x1000, scoped, tag = 'output window, operand 0, single buffered']
    #allocation3 [shape = 's32[1]{0}', space=sflag, size = 0x4, scoped, tag = 'scoped memory for tpu_custom_call.1']
    #allocation4 [shape = 'u8[512]{0}', space=vmem, size = 0x400, scoped, tag = 'output window, operand 1, single buffered']
    #allocation5 [shape = 's32[1]{0}', space=sflag, size = 0x4, scoped, tag = 'scoped memory for tpu_custom_call.1']
    %11 = vsyncpa [#allocation3], 0
    %12 = vsyncpa [#allocation5], 0
    // Predicated region
    $region2: #{tpu_custom_call.1} parent=1 // pred_check
      _
    $region3: #{tpu_custom_call.1} parent=1 // pred_check_branch
      %14 = sbr.rel (0) target = $region5
    $region4: #{tpu_custom_call.1} parent=1 // pred_region
      _
    $region5: #{tpu_custom_call.1} parent=1 // pred_fallthru
      _
    // Predicated region
    $region6: #{tpu_custom_call.1} parent=1 // pred_check
      _
    $region7: #{tpu_custom_call.1} parent=1 // pred_check_branch
      %16 = sbr.rel (0) target = $region9
    $region8: #{tpu_custom_call.1} parent=1 // pred_region
      _
    $region9: #{tpu_custom_call.1} parent=1 // pred_fallthru
      _
    // Predicated region
    $region10: #{tpu_custom_call.1} parent=1 // pred_check
      _
    $region11: #{tpu_custom_call.1} parent=1 // pred_check_branch
      %18 = sbr.rel (0) target = $region13
    $region12: #{tpu_custom_call.1} parent=1 // pred_region
      _
    $region13: #{tpu_custom_call.1} parent=1 // pred_fallthru
      _
    // Predicated region
    $region14: #{tpu_custom_call.1} parent=1 // pred_check
      _
    $region15: #{tpu_custom_call.1} parent=1 // pred_check_branch
      %20 = sbr.rel (0) target = $region17
    $region16: #{tpu_custom_call.1} parent=1 // pred_region
      _
    $region17: #{tpu_custom_call.1} parent=1 // pred_fallthru
      _
    %v22 = vld [vmem:[%s0] sm:$0xff]
    %v23 = vpack.c.bf16 %v22, %v22
    %v24 = vld [vmem:[%s1] sm:$0xf]
    %v25 = vld [vmem:[%s1 + $0x4] sm:$0xf]
    %v26 = vld [vmem:[%s1 + $0x8] sm:$0xf]
    %v27 = vld [vmem:[%s1 + $0xc] sm:$0xf]
    %v28 = vld [vmem:[%s1 + $0x10] sm:$0xf]
    %v29 = vld [vmem:[%s1 + $0x14] sm:$0xf]
    %v30 = vld [vmem:[%s1 + $0x18] sm:$0xf]
    %v31 = vld [vmem:[%s1 + $0x1c] sm:$0xf]
    %v32 = vld [vmem:[%s1 + $0x20] sm:$0xf]
    %v33 = vld [vmem:[%s1 + $0x24] sm:$0xf]
    %v34 = vld [vmem:[%s1 + $0x28] sm:$0xf]
    %v35 = vld [vmem:[%s1 + $0x2c] sm:$0xf]
    %v36 = vld [vmem:[%s1 + $0x30] sm:$0xf]
    %v37 = vld [vmem:[%s1 + $0x34] sm:$0xf]
    %v38 = vld [vmem:[%s1 + $0x38] sm:$0xf]
    %v39 = vld [vmem:[%s1 + $0x3c] sm:$0xf]
    %v56 = vunpack.c.l.b16 %v24
    %v57 = vunpack.c.l.b16 %v25
    %v58 = vunpack.c.l.b16 %v26
    %v59 = vunpack.c.l.b16 %v27
    %v60 = vunpack.c.l.b16 %v28
    %v61 = vunpack.c.l.b16 %v29
    %v62 = vunpack.c.l.b16 %v30
    %v63 = vunpack.c.l.b16 %v31
    %v64 = vunpack.c.l.b16 %v32
    %v65 = vunpack.c.l.b16 %v33
    %v66 = vunpack.c.l.b16 %v34
    %v67 = vunpack.c.l.b16 %v35
    %v68 = vunpack.c.l.b16 %v36
    %v69 = vunpack.c.l.b16 %v37
    %v70 = vunpack.c.l.b16 %v38
    %v71 = vunpack.c.l.b16 %v39
    %v72 = vpack.c.b16 %v57, %v56
    %v73 = vpack.c.b16 %v59, %v58
    %v74 = vpack.c.b16 %v61, %v60
    %v75 = vpack.c.b16 %v63, %v62
    %v76 = vpack.c.b16 %v65, %v64
    %v77 = vpack.c.b16 %v67, %v66
    %v78 = vpack.c.b16 %v69, %v68
    %v79 = vpack.c.b16 %v71, %v70
    %vm80 = vcmask 261120
    %v82 = vsel %vm80, %v23, 0
    %v85 = vsel %vm80, %v72, 0
    %v88 = vsel %vm80, %v73, 0
    %v91 = vsel %vm80, %v74, 0
    %v94 = vsel %vm80, %v75, 0
    %v97 = vsel %vm80, %v76, 0
    %v100 = vsel %vm80, %v77, 0
    %v103 = vsel %vm80, %v78, 0
    %v106 = vsel %vm80, %v79, 0
    %108 = vmatprep.subr.bf16.mxu0 0
    %109 = vmatpush1.bf16.xpose.msra.mxu0 %v85
    %110 = vmatprep.subr.bf16.mxu0 0
    %111 = vmatpush1.bf16.xpose.msra.mxu0 %v88
    %112 = vmatprep.subr.bf16.mxu0 0
    %113 = vmatpush1.bf16.xpose.msra.mxu0 %v91
    %114 = vmatprep.subr.bf16.mxu0 0
    %115 = vmatpush1.bf16.xpose.msra.mxu0 %v94
    %116 = vmatprep.subr.bf16.mxu0 0
    %117 = vmatpush1.bf16.xpose.msra.mxu0 %v97
    %118 = vmatprep.subr.bf16.mxu0 0
    %119 = vmatpush1.bf16.xpose.msra.mxu0 %v100
    %120 = vmatprep.subr.bf16.mxu0 0
    %121 = vmatpush1.bf16.xpose.msra.mxu0 %v103
    %122 = vmatprep.subr.bf16.mxu0 0
    %123 = vmatpush1.bf16.xpose.msra.mxu0 %v106
    %124 = vmatprep.subr.bf16.mxu0 0
    %125 = vmatpush1.bf16.xpose.msra.mxu0 0
    %126 = vmatprep.subr.bf16.mxu0 0
    %127 = vmatpush1.bf16.xpose.msra.mxu0 0
    %128 = vmatprep.subr.bf16.mxu0 0
    %129 = vmatpush1.bf16.xpose.msra.mxu0 0
    %130 = vmatprep.subr.bf16.mxu0 0
    %131 = vmatpush1.bf16.xpose.msra.mxu0 0
    %132 = vmatprep.subr.bf16.mxu0 0
    %133 = vmatpush1.bf16.xpose.msra.mxu0 0
    %134 = vmatprep.subr.bf16.mxu0 0
    %135 = vmatpush1.bf16.xpose.msra.mxu0 0
    %136 = vmatprep.subr.bf16.mxu0 0
    %137 = vmatpush1.bf16.xpose.msra.mxu0 0
    %138 = vmatprep.subr.bf16.mxu0 0
    %139 = vmatpush1.bf16.xpose.msra.mxu0 0
    %140 = vmatprep.mubr.bf16.mxu0 0
    %141 = vmatmul.mubr.bf16.gmra.mrb[0].mxu0 %v82
    %v142 = vpop.f32.mrb[0].mxu0
    %v143 = vadd.f32 0.0, %v142
    %v144 = vpop.f32.mrb[0].mxu0
    %v145 = vpop.f32.mrb[0].mxu0
    %v146 = vpop.f32.mrb[0].mxu0
    %147 = vdwg.mxu0
    %v148 = vld [vmem:[%s3] sm:$0x1]
    %v150 = vlaneseq
    %v151 = vshrl.u32 %v150, 7
    %v152 = vsub.s32 0, %v151
    %v153 = vrot.slane %v148, %v152
    %v155 = vsub.f32 %v143, %v153
    %156 = vmax.index.xlane.f32.xlu0 %v155
    %v157 = vpop.xlane.xlu0 %156
    %v158 = vlaneseq
    %v159 = vand.u32 %v158, 127
    %vm160 = vcmp.eq.s32.totalorder %v159, %v157
    %v161 = vsel %vm160, 1, 0
    %v162 = vcvt.s32.f32 %v161
    %v163 = vpack.c.bf16 %v162, %v162
    %v164 = vld [vmem:[%s2] sm:$0xf]
    %v165 = vld [vmem:[%s2 + $0x4] sm:$0xf]
    %v166 = vld [vmem:[%s2 + $0x8] sm:$0xf]
    %v167 = vld [vmem:[%s2 + $0xc] sm:$0xf]
    %v168 = vld [vmem:[%s2 + $0x10] sm:$0xf]
    %v169 = vld [vmem:[%s2 + $0x14] sm:$0xf]
    %v170 = vld [vmem:[%s2 + $0x18] sm:$0xf]
    %v171 = vld [vmem:[%s2 + $0x1c] sm:$0xf]
    %v172 = vld [vmem:[%s2 + $0x20] sm:$0xf]
    %v173 = vld [vmem:[%s2 + $0x24] sm:$0xf]
    %v174 = vld [vmem:[%s2 + $0x28] sm:$0xf]
    %v175 = vld [vmem:[%s2 + $0x2c] sm:$0xf]
    %v176 = vld [vmem:[%s2 + $0x30] sm:$0xf]
    %v177 = vld [vmem:[%s2 + $0x34] sm:$0xf]
    %v178 = vld [vmem:[%s2 + $0x38] sm:$0xf]
    %v179 = vld [vmem:[%s2 + $0x3c] sm:$0xf]
    %v196 = vunpack.c.l.b16 %v164
    %v197 = vunpack.c.l.b16 %v165
    %v198 = vunpack.c.l.b16 %v166
    %v199 = vunpack.c.l.b16 %v167
    %v200 = vunpack.c.l.b16 %v168
    %v201 = vunpack.c.l.b16 %v169
    %v202 = vunpack.c.l.b16 %v170
    %v203 = vunpack.c.l.b16 %v171
    %v204 = vunpack.c.l.b16 %v172
    %v205 = vunpack.c.l.b16 %v173
    %v206 = vunpack.c.l.b16 %v174
    %v207 = vunpack.c.l.b16 %v175
    %v208 = vunpack.c.l.b16 %v176
    %v209 = vunpack.c.l.b16 %v177
    %v210 = vunpack.c.l.b16 %v178
    %v211 = vunpack.c.l.b16 %v179
    %v212 = vpack.c.b16 %v197, %v196
    %v213 = vpack.c.b16 %v199, %v198
    %v214 = vpack.c.b16 %v201, %v200
    %v215 = vpack.c.b16 %v203, %v202
    %v216 = vpack.c.b16 %v205, %v204
    %v217 = vpack.c.b16 %v207, %v206
    %v218 = vpack.c.b16 %v209, %v208
    %v219 = vpack.c.b16 %v211, %v210
    %228 = vmatprep.subr.bf16.mxu0 0
    %229 = vmatpush1.bf16.msra.mxu0 %v212
    %230 = vmatprep.subr.bf16.mxu0 0
    %231 = vmatpush1.bf16.msra.mxu0 %v213
    %232 = vmatprep.subr.bf16.mxu0 0
    %233 = vmatpush1.bf16.msra.mxu0 %v214
    %234 = vmatprep.subr.bf16.mxu0 0
    %235 = vmatpush1.bf16.msra.mxu0 %v215
    %236 = vmatprep.subr.bf16.mxu0 0
    %237 = vmatpush1.bf16.msra.mxu0 %v216
    %238 = vmatprep.subr.bf16.mxu0 0
    %239 = vmatpush1.bf16.msra.mxu0 %v217
    %240 = vmatprep.subr.bf16.mxu0 0
    %241 = vmatpush1.bf16.msra.mxu0 %v218
    %242 = vmatprep.subr.bf16.mxu0 0
    %243 = vmatpush1.bf16.msra.mxu0 %v219
    %244 = vmatprep.subr.bf16.mxu0 0
    %245 = vmatpush1.bf16.msra.mxu0 0
    %246 = vmatprep.subr.bf16.mxu0 0
    %247 = vmatpush1.bf16.msra.mxu0 0
    %248 = vmatprep.subr.bf16.mxu0 0
    %249 = vmatpush1.bf16.msra.mxu0 0
    %250 = vmatprep.subr.bf16.mxu0 0
    %251 = vmatpush1.bf16.msra.mxu0 0
    %252 = vmatprep.subr.bf16.mxu0 0
    %253 = vmatpush1.bf16.msra.mxu0 0
    %254 = vmatprep.subr.bf16.mxu0 0
    %255 = vmatpush1.bf16.msra.mxu0 0
    %256 = vmatprep.subr.bf16.mxu0 0
    %257 = vmatpush1.bf16.msra.mxu0 0
    %258 = vmatprep.subr.bf16.mxu0 0
    %259 = vmatpush1.bf16.msra.mxu0 0
    %260 = vmatprep.mubr.bf16.mxu0 0
    %261 = vmatmul.mubr.bf16.gmra.mrb[0].mxu0 %v163
    %v262 = vpop.f32.mrb[0].mxu0
    %v263 = vadd.f32 0.0, %v262
    %v264 = vpop.f32.mrb[0].mxu0
    %v265 = vpop.f32.mrb[0].mxu0
    %v266 = vpop.f32.mrb[0].mxu0
    %267 = vdwg.mxu0
    %276 = vmatprep.subr.bf16.mxu0 0
    %277 = vmatpush1.bf16.msra.mxu0 %v72
    %278 = vmatprep.subr.bf16.mxu0 0
    %279 = vmatpush1.bf16.msra.mxu0 %v73
    %280 = vmatprep.subr.bf16.mxu0 0
    %281 = vmatpush1.bf16.msra.mxu0 %v74
    %282 = vmatprep.subr.bf16.mxu0 0
    %283 = vmatpush1.bf16.msra.mxu0 %v75
    %284 = vmatprep.subr.bf16.mxu0 0
    %285 = vmatpush1.bf16.msra.mxu0 %v76
    %286 = vmatprep.subr.bf16.mxu0 0
    %287 = vmatpush1.bf16.msra.mxu0 %v77
    %288 = vmatprep.subr.bf16.mxu0 0
    %289 = vmatpush1.bf16.msra.mxu0 %v78
    %290 = vmatprep.subr.bf16.mxu0 0
    %291 = vmatpush1.bf16.msra.mxu0 %v79
    %292 = vmatprep.subr.bf16.mxu0 0
    %293 = vmatpush1.bf16.msra.mxu0 0
    %294 = vmatprep.subr.bf16.mxu0 0
    %295 = vmatpush1.bf16.msra.mxu0 0
    %296 = vmatprep.subr.bf16.mxu0 0
    %297 = vmatpush1.bf16.msra.mxu0 0
    %298 = vmatprep.subr.bf16.mxu0 0
    %299 = vmatpush1.bf16.msra.mxu0 0
    %300 = vmatprep.subr.bf16.mxu0 0
    %301 = vmatpush1.bf16.msra.mxu0 0
    %302 = vmatprep.subr.bf16.mxu0 0
    %303 = vmatpush1.bf16.msra.mxu0 0
    %304 = vmatprep.subr.bf16.mxu0 0
    %305 = vmatpush1.bf16.msra.mxu0 0
    %306 = vmatprep.subr.bf16.mxu0 0
    %307 = vmatpush1.bf16.msra.mxu0 0
    %308 = vmatprep.mubr.bf16.mxu0 0
    %309 = vmatmul.mubr.bf16.gmra.mrb[0].mxu0 %v163
    %v310 = vpop.f32.mrb[0].mxu0
    %v311 = vadd.f32 %v263, %v310
    %v312 = vpop.f32.mrb[0].mxu0
    %v313 = vpop.f32.mrb[0].mxu0
    %v314 = vpop.f32.mrb[0].mxu0
    %315 = vdwg.mxu0
    %316 = vst.msk [vmem:[#allocation2] sm:$0xff] %vm80, %v311
    %v317 = vcvt.s32.f32 %v159
    %v318 = vpack.c.bf16 %v317, %v317
    %319 = vmatprep.subr.bf16.mxu0 0
    %320 = vmatpush1.bf16.xpose.msra.mxu0 %v163
    %321 = vmatprep.subr.bf16.mxu0 0
    %322 = vmatpush1.bf16.xpose.msra.mxu0 0
    %323 = vmatprep.subr.bf16.mxu0 0
    %324 = vmatpush1.bf16.xpose.msra.mxu0 0
    %325 = vmatprep.subr.bf16.mxu0 0
    %326 = vmatpush1.bf16.xpose.msra.mxu0 0
    %327 = vmatprep.subr.bf16.mxu0 0
    %328 = vmatpush1.bf16.xpose.msra.mxu0 0
    %329 = vmatprep.subr.bf16.mxu0 0
    %330 = vmatpush1.bf16.xpose.msra.mxu0 0
    %331 = vmatprep.subr.bf16.mxu0 0
    %332 = vmatpush1.bf16.xpose.msra.mxu0 0
    %333 = vmatprep.subr.bf16.mxu0 0
    %334 = vmatpush1.bf16.xpose.msra.mxu0 0
    %335 = vmatprep.subr.bf16.mxu0 0
    %336 = vmatpush1.bf16.xpose.msra.mxu0 0
    %337 = vmatprep.subr.bf16.mxu0 0
    %338 = vmatpush1.bf16.xpose.msra.mxu0 0
    %339 = vmatprep.subr.bf16.mxu0 0
    %340 = vmatpush1.bf16.xpose.msra.mxu0 0
    %341 = vmatprep.subr.bf16.mxu0 0
    %342 = vmatpush1.bf16.xpose.msra.mxu0 0
    %343 = vmatprep.subr.bf16.mxu0 0
    %344 = vmatpush1.bf16.xpose.msra.mxu0 0
    %345 = vmatprep.subr.bf16.mxu0 0
    %346 = vmatpush1.bf16.xpose.msra.mxu0 0
    %347 = vmatprep.subr.bf16.mxu0 0
    %348 = vmatpush1.bf16.xpose.msra.mxu0 0
    %349 = vmatprep.subr.bf16.mxu0 0
    %350 = vmatpush1.bf16.xpose.msra.mxu0 0
    %351 = vmatprep.mubr.bf16.mxu0 0
    %352 = vmatmul.mubr.bf16.gmra.mrb[0].mxu0 %v318
    %v353 = vpop.f32.mrb[0].mxu0
    %v354 = vadd.f32 0.0, %v353
    %v355 = vpop.f32.mrb[0].mxu0
    %v356 = vpop.f32.mrb[0].mxu0
    %v357 = vpop.f32.mrb[0].mxu0
    %358 = vdwg.mxu0
    %v359 = vcvt.f32.s32.to.zero.pseudo %v354
    %vm360 = vcmask 57344
    %361 = vst.msk [vmem:[#allocation4] sm:$0x1] %vm360, %v359
    // Predicated region
    $region18: #{tpu_custom_call.1} parent=1 // pred_check
      _
    $region19: #{tpu_custom_call.1} parent=1 // pred_check_branch
      %363 = sbr.rel (0) target = $region21
    $region20: #{tpu_custom_call.1} parent=1 // pred_region
      %s365 = ssub.s32 128, 128
      %366 = vsyncadd [#allocation3], %s365
      %s368 = sshll.u32 [#allocation2], 4
      %s369 = int_to_ptr.vmem [resolvable:$true] %s368
      %371 = dma.vmem_to_hbm [thread:$0]  %s369, 128, %s4, [#allocation3]
    $region21: #{tpu_custom_call.1} parent=1 // pred_fallthru
      _
    // Predicated region
    $region22: #{tpu_custom_call.1} parent=1 // pred_check
      _
    $region23: #{tpu_custom_call.1} parent=1 // pred_check_branch
      %373 = sbr.rel (0) target = $region25
    $region24: #{tpu_custom_call.1} parent=1 // pred_region
      %s375 = ssub.s32 16, 16
      %376 = vsyncadd [#allocation5], %s375
      %s378 = sshll.u32 [#allocation4], 4
      %s379 = int_to_ptr.vmem [resolvable:$true] %s378
      %381 = dma.vmem_to_hbm [thread:$0]  %s379, 16, %s5, [#allocation5]
    $region25: #{tpu_custom_call.1} parent=1 // pred_fallthru
      _
    // Predicated region
    $region26: #{tpu_custom_call.1} parent=1 // pred_check
      _
    $region27: #{tpu_custom_call.1} parent=1 // pred_check_branch
      %383 = sbr.rel (0) target = $region29
    $region28: #{tpu_custom_call.1} parent=1 // pred_region
      %384 = dma.done [#allocation3], 128
    $region29: #{tpu_custom_call.1} parent=1 // pred_fallthru
      _
    // Predicated region
    $region30: #{tpu_custom_call.1} parent=1 // pred_check
      _
    $region31: #{tpu_custom_call.1} parent=1 // pred_check_branch
      %386 = sbr.rel (0) target = $region33
    $region32: #{tpu_custom_call.1} parent=1 // pred_region
      %387 = dma.done [#allocation5], 16
    $region33: #{tpu_custom_call.1} parent=1 // pred_fallthru
      _
    %388 = vsyncpa [#allocation3], 1
    %389 = vsyncpa [#allocation5], 1

</llo_original>
